<compile_context>
chip_gen: v5e
topology: v5e:2x2
jax: 0.10.0
libtpu: 0.0.40
codegen_flags: <defaults>
</compile_context>

<pallas_src>
import functools

import jax
import jax.numpy as jnp
from jax.experimental import pallas as pl
from jax.experimental.pallas import tpu as pltpu

EPS_BN = 1e-4   # BatchNorm1d(eps=0.0001)
EPS_TN = 1e-4   # TensorNorm default eps
_LANE = 128
_SUBLANE = 8


def _round_up(x, m):
    return (x + m - 1) // m * m


def _quant(x, bit_width, scale):
    """Brevitas CommonQuant semantics (signed, narrow-range, const scaling).

    bit_width == 1  -> binary: x >= 0 ? +scale : -scale  (0 maps to +scale,
                       matching Brevitas binary quant)
    bit_width  > 1  -> clip(round(x / s), -n, n) * s, n = 2^(b-1)-1, s = scale/n
    bit_width None  -> identity (no quantization)
    """
    if bit_width is None:
        return x
    if bit_width == 1:
        return jnp.where(x >= 0, scale, -scale).astype(x.dtype)
    n = float(2 ** (bit_width - 1) - 1)
    s = scale / n
    return jnp.clip(jnp.round(x / s), -n, n) * s


# ---------------------------------------------------------------------------
# Fused kernel: entire MLP forward on one batch tile.
#   refs = (x_ref, [w, scale, bias] * (n_hidden + 1), o_ref)
# Weights are already quantized & padded on the host; BN / TensorNorm are
# pre-folded into (scale, bias).
# ---------------------------------------------------------------------------
def _fc_fused_kernel(*refs, n_hidden, in_bw, act_bw, compute_dtype):
    x_ref = refs[0]
    o_ref = refs[-1]
    lrefs = refs[1:-1]

    # forward(): x = 2.0 * x - 1.0, then input QuantIdentity(in_bit_width).
    # Dropout(p=0.2) is identity in eval mode.
    x = 2.0 * x_ref[...] - 1.0
    x = _quant(x, in_bw, 1.0)
    h = x.astype(compute_dtype)

    # Hidden layers: QuantLinear (pre-quantized weights) -> folded BN -> act quant.
    for li in range(n_hidden):
        w_ref, s_ref, b_ref = lrefs[3 * li:3 * li + 3]
        y = jnp.dot(h, w_ref[...], preferred_element_type=jnp.float32)
        y = y * s_ref[...] + b_ref[...]                 # folded BatchNorm1d (eval)
        h = _quant(y, act_bw, 1.0).astype(compute_dtype)  # CommonActQuant

    # Final QuantLinear + folded TensorNorm (eval).
    wf_ref, sf_ref, bf_ref = lrefs[3 * n_hidden:3 * n_hidden + 3]
    y = jnp.dot(h, wf_ref[...], preferred_element_type=jnp.float32)
    o_ref[...] = y * sf_ref[...] + bf_ref[...]


# ---------------------------------------------------------------------------
# Host-side parameter preparation: quantize weights, fold norms, pad to
# lane/sublane-friendly shapes, pick the matmul compute dtype.
# ---------------------------------------------------------------------------
def fc_prepare(params, *, weight_bw, act_bw, in_bw):
    # bf16 is lossless only when every matmul operand is exactly +/-1
    # (fully binarized W1A1 with binarized input quant).
    binary = (weight_bw == 1 and act_bw == 1 and in_bw == 1)
    compute_dtype = jnp.bfloat16 if binary else jnp.float32

    layers = []
    for lyr in params["hidden"]:
        w = _quant(lyr["w"], weight_bw, 1.0)            # CommonWeightQuant on host
        k, n = w.shape
        kp, np_ = _round_up(k, _LANE), _round_up(n, _LANE)
        w_pad = jnp.zeros((kp, np_), jnp.float32).at[:k, :n].set(w)
        w_pad = w_pad.astype(compute_dtype)
        # Fold BatchNorm1d (eval) into scale/bias.
        scale = lyr["gamma"] * jax.lax.rsqrt(lyr["var"] + EPS_BN)
        bias = lyr["beta"] - lyr["mean"] * scale
        s_pad = jnp.zeros((1, np_), jnp.float32).at[:, :n].set(scale)
        b_pad = jnp.zeros((1, np_), jnp.float32).at[:, :n].set(bias)
        layers.append((w_pad, s_pad, b_pad))

    wf = _quant(params["final"]["w"], weight_bw, 1.0)
    k, n = wf.shape
    kp, np_ = _round_up(k, _LANE), _round_up(n, _LANE)
    wf_pad = jnp.zeros((kp, np_), jnp.float32).at[:k, :n].set(wf)
    wf_pad = wf_pad.astype(compute_dtype)
    # Fold TensorNorm (eval) into scalar scale/bias, broadcast lane-dense.
    rm, rv, g, b = params["final"]["tn"]
    tn_scale = g * jax.lax.rsqrt(rv + EPS_TN)
    tn_bias = b - rm * tn_scale
    sf_pad = jnp.full((1, np_), tn_scale, jnp.float32)
    bf_pad = jnp.full((1, np_), tn_bias, jnp.float32)
    layers.append((wf_pad, sf_pad, bf_pad))

    return {"layers": layers, "compute_dtype": compute_dtype,
            "num_classes": n}


# ---------------------------------------------------------------------------
# Fused forward pass.
# ---------------------------------------------------------------------------
def fc_apply(prepared, x, *, in_bw, act_bw):
    layers = prepared["layers"]
    compute_dtype = prepared["compute_dtype"]
    num_classes = prepared["num_classes"]
    n_hidden = len(layers) - 1

    B = x.shape[0]
    h = x.reshape(B, -1).astype(jnp.float32)
    K = h.shape[1]
    Kp = layers[0][0].shape[0]          # padded input-feature dim
    Np = layers[-1][0].shape[1]         # padded final output dim

    # Sublane-dense batch: pad to a multiple of 8 (tile at most 256 rows).
    tile_b = min(256, _round_up(B, _SUBLANE))
    b_pad = _round_up(B, tile_b)
    h_pad = jnp.zeros((b_pad, Kp), jnp.float32).at[:B, :K].set(h)

    in_specs = [pl.BlockSpec((tile_b, Kp), lambda i: (i, 0))]
    operands = [h_pad]
    for (w, s, b) in layers:
        # Constant index maps: weights / folded-norm vectors stay VMEM-resident
        # across batch-grid steps.
        in_specs += [pl.BlockSpec(w.shape, lambda i: (0, 0)),
                     pl.BlockSpec(s.shape, lambda i: (0, 0)),
                     pl.BlockSpec(b.shape, lambda i: (0, 0))]
        operands += [w, s, b]

    kern = functools.partial(_fc_fused_kernel, n_hidden=n_hidden,
                             in_bw=in_bw, act_bw=act_bw,
                             compute_dtype=compute_dtype)
    out = pl.pallas_call(
        kern,
        out_shape=jax.ShapeDtypeStruct((b_pad, Np), jnp.float32),
        grid=(b_pad // tile_b,),
        in_specs=in_specs,
        out_specs=pl.BlockSpec((tile_b, Np), lambda i: (i, 0)),
        compiler_params=pltpu.CompilerParams(
            dimension_semantics=("parallel",)),
    )(*operands)
    return out[:B, :num_classes]


def fc_forward(params, x, *, weight_bw, act_bw, in_bw):
    prepared = fc_prepare(params, weight_bw=weight_bw, act_bw=act_bw,
                          in_bw=in_bw)
    return fc_apply(prepared, x, in_bw=in_bw, act_bw=act_bw)


# ---------------------------------------------------------------------------
# Parameter init mirroring the PyTorch module's __init__.
# ---------------------------------------------------------------------------
def fc_init(key, *, num_classes, in_channels, out_features, in_features):
    del in_channels  # FC flattens everything; feature dims come from in_features
    params = {"hidden": [], "final": {}}
    in_f = in_features[0] * in_features[1]
    for out_f in out_features:
        key, kw = jax.random.split(key)
        params["hidden"].append({
            # torch.nn.init.uniform_(m.weight, -1, 1); stored as [in, out]
            "w": jax.random.uniform(kw, (in_f, out_f), jnp.float32, -1.0, 1.0),
            # BatchNorm1d defaults: gamma=1, beta=0, running_mean=0, running_var=1
            "gamma": jnp.ones((1, out_f), jnp.float32),
            "beta": jnp.zeros((1, out_f), jnp.float32),
            "mean": jnp.zeros((1, out_f), jnp.float32),
            "var": jnp.ones((1, out_f), jnp.float32),
        })
        in_f = out_f
    key, kw, kg, kb = jax.random.split(key, 4)
    params["final"]["w"] = jax.random.uniform(
        kw, (in_f, num_classes), jnp.float32, -1.0, 1.0)
    # TensorNorm: weight=rand(1), bias=rand(1), running_mean=0, running_var=1
    tn_g = jax.random.uniform(kg, (), jnp.float32)
    tn_b = jax.random.uniform(kb, (), jnp.float32)
    params["final"]["tn"] = jnp.stack(
        [jnp.float32(0.0), jnp.float32(1.0), tn_g, tn_b])  # [mean, var, g, b]
    return params


# Pure-JAX reference (original, unfolded semantics) for a correctness check.
def _ref_forward(params, x, *, weight_bw, act_bw, in_bw):
    B = x.shape[0]
    h = x.reshape(B, -1)
    h = 2.0 * h - 1.0
    h = _quant(h, in_bw, 1.0)
    for lyr in params["hidden"]:
        w = _quant(lyr["w"], weight_bw, 1.0)
        y = h @ w
        inv = jax.lax.rsqrt(lyr["var"] + EPS_BN)
        y = (y - lyr["mean"]) * inv * lyr["gamma"] + lyr["beta"]
        h = _quant(y, act_bw, 1.0)
    wf = _quant(params["final"]["w"], weight_bw, 1.0)
    y = h @ wf
    rm, rv, g, b = params["final"]["tn"]
    return (y - rm) * jax.lax.rsqrt(rv + EPS_TN) * g + b


if __name__ == "__main__":
    # Small, module-consistent shapes: batch=2, in_channels=1, spatial=16x16,
    # two hidden layers of 128, 10 classes; W1A1 (fully binarized) config.
    key = jax.random.PRNGKey(0)
    B, C, H, W = 2, 1, 16, 16
    num_classes = 10
    out_features = [128, 128]
    weight_bw, act_bw, in_bw = 1, 1, 1

    key, kp, kx = jax.random.split(key, 3)
    params = fc_init(kp, num_classes=num_classes, in_channels=C,
                     out_features=out_features, in_features=(H, W))
    x = jax.random.uniform(kx, (B, C, H, W), jnp.float32)  # e.g. images in [0,1)

    y = fc_forward(params, x, weight_bw=weight_bw, act_bw=act_bw, in_bw=in_bw)
    jax.block_until_ready(y)
    assert y.shape == (B, num_classes) and y.dtype == jnp.float32

    y_ref = _ref_forward(params, x, weight_bw=weight_bw, act_bw=act_bw,
                         in_bw=in_bw)
    assert jnp.allclose(y, y_ref, rtol=1e-4, atol=1e-4), (
        "fused Pallas forward diverged from reference")
    # TODO(synk): training-mode Dropout / batch-statistics BatchNorm & TensorNorm
    # are not implemented (inference semantics only).
    print("KERNEL_OK")
</pallas_src>

<mosaic_0001>
module attributes {stable_mosaic.version = 11 : i64} {
  func.func @_fc_fused_kernel(%arg0: i32, %arg1: memref<8x256xf32, #tpu.memory_space<vmem>>, %arg2: memref<256x128xbf16, #tpu.memory_space<vmem>>, %arg3: memref<1x128xf32, #tpu.memory_space<vmem>>, %arg4: memref<1x128xf32, #tpu.memory_space<vmem>>, %arg5: memref<128x128xbf16, #tpu.memory_space<vmem>>, %arg6: memref<1x128xf32, #tpu.memory_space<vmem>>, %arg7: memref<1x128xf32, #tpu.memory_space<vmem>>, %arg8: memref<128x128xbf16, #tpu.memory_space<vmem>>, %arg9: memref<1x128xf32, #tpu.memory_space<vmem>>, %arg10: memref<1x128xf32, #tpu.memory_space<vmem>>, %arg11: memref<8x128xf32, #tpu.memory_space<vmem>>) attributes {dimension_semantics = [#tpu.dimension_semantics<parallel>], iteration_bounds = array<i64: 1>, scalar_prefetch = 0 : i64, scratch_operands = 0 : i64, tpu.core_type = #tpu.core_type<tc>, window_params = [{transform_indices = @transform_0, window_bounds = array<i64: 8, 256>}, {pipeline_mode = #tpu.pipeline_mode<synchronous>, transform_indices = @transform_1, window_bounds = array<i64: 256, 128>}, {pipeline_mode = #tpu.pipeline_mode<synchronous>, transform_indices = @transform_2, window_bounds = array<i64: 1, 128>}, {pipeline_mode = #tpu.pipeline_mode<synchronous>, transform_indices = @transform_3, window_bounds = array<i64: 1, 128>}, {pipeline_mode = #tpu.pipeline_mode<synchronous>, transform_indices = @transform_4, window_bounds = array<i64: 128, 128>}, {pipeline_mode = #tpu.pipeline_mode<synchronous>, transform_indices = @transform_5, window_bounds = array<i64: 1, 128>}, {pipeline_mode = #tpu.pipeline_mode<synchronous>, transform_indices = @transform_6, window_bounds = array<i64: 1, 128>}, {pipeline_mode = #tpu.pipeline_mode<synchronous>, transform_indices = @transform_7, window_bounds = array<i64: 128, 128>}, {pipeline_mode = #tpu.pipeline_mode<synchronous>, transform_indices = @transform_8, window_bounds = array<i64: 1, 128>}, {pipeline_mode = #tpu.pipeline_mode<synchronous>, transform_indices = @transform_9, window_bounds = array<i64: 1, 128>}, {transform_indices = @transform_10, window_bounds = array<i64: 8, 128>}]} {
    %c0 = arith.constant 0 : index
    %c0_0 = arith.constant 0 : index
    %0 = vector.load %arg1[%c0, %c0_0] : memref<8x256xf32, #tpu.memory_space<vmem>>, vector<8x256xf32>
    %cst = arith.constant 2.000000e+00 : f32
    %1 = vector.broadcast %cst : f32 to vector<8x256xf32>
    %2 = arith.mulf %1, %0 : vector<8x256xf32>
    %cst_1 = arith.constant 1.000000e+00 : f32
    %3 = vector.broadcast %cst_1 : f32 to vector<8x256xf32>
    %4 = arith.subf %2, %3 : vector<8x256xf32>
    %cst_2 = arith.constant 0.000000e+00 : f32
    %5 = vector.broadcast %cst_2 : f32 to vector<8x256xf32>
    %6 = arith.cmpf oge, %4, %5 : vector<8x256xf32>
    %cst_3 = arith.constant 1.000000e+00 : f32
    %cst_4 = arith.constant -1.000000e+00 : f32
    %7 = vector.broadcast %cst_3 : f32 to vector<8x256xf32>
    %8 = vector.broadcast %cst_4 : f32 to vector<8x256xf32>
    %9 = arith.select %6, %7, %8 : vector<8x256xi1>, vector<8x256xf32>
    %10 = arith.truncf %9 : vector<8x256xf32> to vector<8x256xbf16>
    %c0_5 = arith.constant 0 : index
    %c0_6 = arith.constant 0 : index
    %11 = vector.load %arg2[%c0_5, %c0_6] : memref<256x128xbf16, #tpu.memory_space<vmem>>, vector<256x128xbf16>
    %cst_7 = arith.constant dense<0.000000e+00> : vector<8x128xf32>
    %12 = tpu.matmul %10, %11, %cst_7 {dimension_numbers = #tpu.dot_dimension_numbers<[1], [0], [0], [1], [0, 0, 1, 1], [], []>} : vector<8x256xbf16>, vector<256x128xbf16>, vector<8x128xf32> -> vector<8x128xf32>
    %c0_8 = arith.constant 0 : index
    %c0_9 = arith.constant 0 : index
    %13 = vector.load %arg3[%c0_8, %c0_9] : memref<1x128xf32, #tpu.memory_space<vmem>>, vector<1x128xf32>
    %14 = vector.broadcast %13 : vector<1x128xf32> to vector<8x128xf32>
    %15 = arith.mulf %12, %14 : vector<8x128xf32>
    %c0_10 = arith.constant 0 : index
    %c0_11 = arith.constant 0 : index
    %16 = vector.load %arg4[%c0_10, %c0_11] : memref<1x128xf32, #tpu.memory_space<vmem>>, vector<1x128xf32>
    %17 = vector.broadcast %16 : vector<1x128xf32> to vector<8x128xf32>
    %18 = arith.addf %15, %17 : vector<8x128xf32>
    %cst_12 = arith.constant 0.000000e+00 : f32
    %19 = vector.broadcast %cst_12 : f32 to vector<8x128xf32>
    %20 = arith.cmpf oge, %18, %19 : vector<8x128xf32>
    %cst_13 = arith.constant 1.000000e+00 : f32
    %cst_14 = arith.constant -1.000000e+00 : f32
    %21 = vector.broadcast %cst_13 : f32 to vector<8x128xf32>
    %22 = vector.broadcast %cst_14 : f32 to vector<8x128xf32>
    %23 = arith.select %20, %21, %22 : vector<8x128xi1>, vector<8x128xf32>
    %24 = arith.truncf %23 : vector<8x128xf32> to vector<8x128xbf16>
    %c0_15 = arith.constant 0 : index
    %c0_16 = arith.constant 0 : index
    %25 = vector.load %arg5[%c0_15, %c0_16] : memref<128x128xbf16, #tpu.memory_space<vmem>>, vector<128x128xbf16>
    %cst_17 = arith.constant dense<0.000000e+00> : vector<8x128xf32>
    %26 = tpu.matmul %24, %25, %cst_17 {dimension_numbers = #tpu.dot_dimension_numbers<[1], [0], [0], [1], [0, 0, 1, 1], [], []>} : vector<8x128xbf16>, vector<128x128xbf16>, vector<8x128xf32> -> vector<8x128xf32>
    %c0_18 = arith.constant 0 : index
    %c0_19 = arith.constant 0 : index
    %27 = vector.load %arg6[%c0_18, %c0_19] : memref<1x128xf32, #tpu.memory_space<vmem>>, vector<1x128xf32>
    %28 = vector.broadcast %27 : vector<1x128xf32> to vector<8x128xf32>
    %29 = arith.mulf %26, %28 : vector<8x128xf32>
    %c0_20 = arith.constant 0 : index
    %c0_21 = arith.constant 0 : index
    %30 = vector.load %arg7[%c0_20, %c0_21] : memref<1x128xf32, #tpu.memory_space<vmem>>, vector<1x128xf32>
    %31 = vector.broadcast %30 : vector<1x128xf32> to vector<8x128xf32>
    %32 = arith.addf %29, %31 : vector<8x128xf32>
    %cst_22 = arith.constant 0.000000e+00 : f32
    %33 = vector.broadcast %cst_22 : f32 to vector<8x128xf32>
    %34 = arith.cmpf oge, %32, %33 : vector<8x128xf32>
    %cst_23 = arith.constant 1.000000e+00 : f32
    %cst_24 = arith.constant -1.000000e+00 : f32
    %35 = vector.broadcast %cst_23 : f32 to vector<8x128xf32>
    %36 = vector.broadcast %cst_24 : f32 to vector<8x128xf32>
    %37 = arith.select %34, %35, %36 : vector<8x128xi1>, vector<8x128xf32>
    %38 = arith.truncf %37 : vector<8x128xf32> to vector<8x128xbf16>
    %c0_25 = arith.constant 0 : index
    %c0_26 = arith.constant 0 : index
    %39 = vector.load %arg8[%c0_25, %c0_26] : memref<128x128xbf16, #tpu.memory_space<vmem>>, vector<128x128xbf16>
    %cst_27 = arith.constant dense<0.000000e+00> : vector<8x128xf32>
    %40 = tpu.matmul %38, %39, %cst_27 {dimension_numbers = #tpu.dot_dimension_numbers<[1], [0], [0], [1], [0, 0, 1, 1], [], []>} : vector<8x128xbf16>, vector<128x128xbf16>, vector<8x128xf32> -> vector<8x128xf32>
    %c0_28 = arith.constant 0 : index
    %c0_29 = arith.constant 0 : index
    %41 = vector.load %arg9[%c0_28, %c0_29] : memref<1x128xf32, #tpu.memory_space<vmem>>, vector<1x128xf32>
    %42 = vector.broadcast %41 : vector<1x128xf32> to vector<8x128xf32>
    %43 = arith.mulf %40, %42 : vector<8x128xf32>
    %c0_30 = arith.constant 0 : index
    %c0_31 = arith.constant 0 : index
    %44 = vector.load %arg10[%c0_30, %c0_31] : memref<1x128xf32, #tpu.memory_space<vmem>>, vector<1x128xf32>
    %45 = vector.broadcast %44 : vector<1x128xf32> to vector<8x128xf32>
    %46 = arith.addf %43, %45 : vector<8x128xf32>
    %c0_32 = arith.constant 0 : index
    %c0_33 = arith.constant 0 : index
    %47 = vector.load %arg11[%c0_32, %c0_33] : memref<8x128xf32, #tpu.memory_space<vmem>>, vector<8x128xf32>
    tpu.vector_store %arg11[%c0_32, %c0_33], %46 {strides = array<i32>} : memref<8x128xf32, #tpu.memory_space<vmem>>, vector<8x128xf32>,
    return
  }
  func.func @transform_0(%arg0: i32) -> (i32, i32) {
    %c0_i32 = arith.constant 0 : i32
    %c0_i32_0 = arith.constant 0 : i32
    return %arg0, %c0_i32 : i32, i32
  }
  func.func @transform_1(%arg0: i32) -> (i32, i32) {
    %c0_i32 = arith.constant 0 : i32
    %c0_i32_0 = arith.constant 0 : i32
    %c0_i32_1 = arith.constant 0 : i32
    return %c0_i32, %c0_i32_0 : i32, i32
  }
  func.func @transform_2(%arg0: i32) -> (i32, i32) {
    %c0_i32 = arith.constant 0 : i32
    %c0_i32_0 = arith.constant 0 : i32
    %c0_i32_1 = arith.constant 0 : i32
    return %c0_i32, %c0_i32_0 : i32, i32
  }
  func.func @transform_3(%arg0: i32) -> (i32, i32) {
    %c0_i32 = arith.constant 0 : i32
    %c0_i32_0 = arith.constant 0 : i32
    %c0_i32_1 = arith.constant 0 : i32
    return %c0_i32, %c0_i32_0 : i32, i32
  }
  func.func @transform_4(%arg0: i32) -> (i32, i32) {
    %c0_i32 = arith.constant 0 : i32
    %c0_i32_0 = arith.constant 0 : i32
    %c0_i32_1 = arith.constant 0 : i32
    return %c0_i32, %c0_i32_0 : i32, i32
  }
  func.func @transform_5(%arg0: i32) -> (i32, i32) {
    %c0_i32 = arith.constant 0 : i32
    %c0_i32_0 = arith.constant 0 : i32
    %c0_i32_1 = arith.constant 0 : i32
    return %c0_i32, %c0_i32_0 : i32, i32
  }
  func.func @transform_6(%arg0: i32) -> (i32, i32) {
    %c0_i32 = arith.constant 0 : i32
    %c0_i32_0 = arith.constant 0 : i32
    %c0_i32_1 = arith.constant 0 : i32
    return %c0_i32, %c0_i32_0 : i32, i32
  }
  func.func @transform_7(%arg0: i32) -> (i32, i32) {
    %c0_i32 = arith.constant 0 : i32
    %c0_i32_0 = arith.constant 0 : i32
    %c0_i32_1 = arith.constant 0 : i32
    return %c0_i32, %c0_i32_0 : i32, i32
  }
  func.func @transform_8(%arg0: i32) -> (i32, i32) {
    %c0_i32 = arith.constant 0 : i32
    %c0_i32_0 = arith.constant 0 : i32
    %c0_i32_1 = arith.constant 0 : i32
    return %c0_i32, %c0_i32_0 : i32, i32
  }
  func.func @transform_9(%arg0: i32) -> (i32, i32) {
    %c0_i32 = arith.constant 0 : i32
    %c0_i32_0 = arith.constant 0 : i32
    %c0_i32_1 = arith.constant 0 : i32
    return %c0_i32, %c0_i32_0 : i32, i32
  }
  func.func @transform_10(%arg0: i32) -> (i32, i32) {
    %c0_i32 = arith.constant 0 : i32
    %c0_i32_0 = arith.constant 0 : i32
    return %arg0, %c0_i32 : i32, i32
  }
}

</mosaic_0001>

<llo_original>
// kernel: tpu_custom_call.1
$region0: #{tpu_custom_call.1}
  #allocation0 [shape = 'u32[]', space=smem, size = 0x4, offset = 0x4, fixed_abs, tag = 'smem constant byte address 0x4 - core index']
  #allocation1 [shape = 'u32[72,128]{1,0:T(1,128)}', space=vmem, size = 0x9000, scoped, tag = 'internal scratch']
  %s0 = inlined_call_operand.hbm [shape: f32[8,256], index: 0, kind: input, shape index: {}]
  %s1 = inlined_call_operand.hbm [shape: bf16[256,128], index: 1, kind: input, shape index: {}]
  %s2 = inlined_call_operand.vmem [shape: f32[1,128], index: 2, kind: input, shape index: {}]
  %s3 = inlined_call_operand.vmem [shape: f32[1,128], index: 3, kind: input, shape index: {}]
  %s4 = inlined_call_operand.hbm [shape: bf16[128,128], index: 4, kind: input, shape index: {}]
  %s5 = inlined_call_operand.vmem [shape: f32[1,128], index: 5, kind: input, shape index: {}]
  %s6 = inlined_call_operand.vmem [shape: f32[1,128], index: 6, kind: input, shape index: {}]
  %s7 = inlined_call_operand.hbm [shape: bf16[128,128], index: 7, kind: input, shape index: {}]
  %s8 = inlined_call_operand.vmem [shape: f32[1,128], index: 8, kind: input, shape index: {}]
  %s9 = inlined_call_operand.vmem [shape: f32[1,128], index: 9, kind: input, shape index: {}]
  %s10 = inlined_call_operand.hbm [shape: f32[8,128], index: 10, kind: output, shape index: {}]
  %s11 = sld [smem:[#allocation0]]
  $region66: #{tpu_custom_call.1} parent=0
    _
  %s13 = ssub.s32 1, %s11
  %s14 = scalar_select 0, %s13, %s11
  $region1: #{tpu_custom_call.1} parent=0
    #allocation2 [shape = 'u8[8192]{0}', space=vmem, size = 0x2000, scoped, tag = 'input window, operand 0, single buffered']
    #allocation3 [shape = 's32[1]{0}', space=sflag, size = 0x4, scoped, tag = 'scoped memory for tpu_custom_call.1']
    #allocation4 [shape = 's32[1]{0}', space=sflag, size = 0x4, scoped, tag = 'scoped memory for tpu_custom_call.1']
    #allocation5 [shape = 'u8[65536]{0}', space=vmem, size = 0x10000, scoped, tag = 'input window, operand 1, single buffered']
    #allocation6 [shape = 's32[1]{0}', space=sflag, size = 0x4, scoped, tag = 'scoped memory for tpu_custom_call.1']
    #allocation7 [shape = 'u8[32768]{0}', space=vmem, size = 0x8000, scoped, tag = 'input window, operand 4, single buffered']
    #allocation8 [shape = 'u8[32768]{0}', space=vmem, size = 0x8000, scoped, tag = 'input window, operand 7, single buffered']
    #allocation9 [shape = 's32[1]{0}', space=sflag, size = 0x4, scoped, tag = 'scoped memory for tpu_custom_call.1']
    #allocation10 [shape = 'u8[4096]{0}', space=vmem, size = 0x1000, scoped, tag = 'output window, operand 0, single buffered']
    %15 = vsyncpa [#allocation3], 0
    %16 = vsyncpa [#allocation6], 0
    %17 = vsyncpa [#allocation9], 0
    %18 = vsyncpa [#allocation4], 0
    // Predicated region
    $region2: #{tpu_custom_call.1} parent=1 // pred_check
      _
    $region3: #{tpu_custom_call.1} parent=1 // pred_check_branch
      %20 = sbr.rel (0) target = $region5
    $region4: #{tpu_custom_call.1} parent=1 // pred_region
      %22 = vsyncadd [#allocation3], 0
      %s24 = sshll.u32 %s0, 4
      %s25 = int_to_ptr.hbm [resolvable:$true] %s24
      %s26 = sshll.u32 [#allocation2], 4
      %s27 = int_to_ptr.vmem [resolvable:$true] %s26
      %29 = dma.hbm_to_vmem [thread:$0]  %s25, 256, %s27, [#allocation3]
    $region5: #{tpu_custom_call.1} parent=1 // pred_fallthru
      _
    // Predicated region
    $region6: #{tpu_custom_call.1} parent=1 // pred_check
      _
    $region7: #{tpu_custom_call.1} parent=1 // pred_check_branch
      %31 = sbr.rel (0) target = $region9
    $region8: #{tpu_custom_call.1} parent=1 // pred_region
      %33 = vsyncadd [#allocation6], 0
      %s34 = sshll.u32 %s1, 4
      %s35 = int_to_ptr.hbm [resolvable:$true] %s34
      %s36 = sshll.u32 [#allocation5], 4
      %s37 = int_to_ptr.vmem [resolvable:$true] %s36
      %42 = dma.hbm_to_vmem [thread:$0]  %s35, 2048, %s37, [#allocation6], 64, 64, 4
    $region9: #{tpu_custom_call.1} parent=1 // pred_fallthru
      _
    // Predicated region
    $region10: #{tpu_custom_call.1} parent=1 // pred_check
      _
    $region11: #{tpu_custom_call.1} parent=1 // pred_check_branch
      %44 = sbr.rel (0) target = $region13
    $region12: #{tpu_custom_call.1} parent=1 // pred_region
      _
    $region13: #{tpu_custom_call.1} parent=1 // pred_fallthru
      _
    // Predicated region
    $region14: #{tpu_custom_call.1} parent=1 // pred_check
      _
    $region15: #{tpu_custom_call.1} parent=1 // pred_check_branch
      %46 = sbr.rel (0) target = $region17
    $region16: #{tpu_custom_call.1} parent=1 // pred_region
      _
    $region17: #{tpu_custom_call.1} parent=1 // pred_fallthru
      _
    // Predicated region
    $region18: #{tpu_custom_call.1} parent=1 // pred_check
      _
    $region19: #{tpu_custom_call.1} parent=1 // pred_check_branch
      %48 = sbr.rel (0) target = $region21
    $region20: #{tpu_custom_call.1} parent=1 // pred_region
      %50 = vsyncadd [#allocation6], 0
      %s51 = sshll.u32 %s4, 4
      %s52 = int_to_ptr.hbm [resolvable:$true] %s51
      %s53 = sshll.u32 [#allocation7], 4
      %s54 = int_to_ptr.vmem [resolvable:$true] %s53
      %59 = dma.hbm_to_vmem [thread:$0]  %s52, 1024, %s54, [#allocation6], 64, 64, 4
    $region21: #{tpu_custom_call.1} parent=1 // pred_fallthru
      _
    // Predicated region
    $region22: #{tpu_custom_call.1} parent=1 // pred_check
      _
    $region23: #{tpu_custom_call.1} parent=1 // pred_check_branch
      %61 = sbr.rel (0) target = $region25
    $region24: #{tpu_custom_call.1} parent=1 // pred_region
      _
    $region25: #{tpu_custom_call.1} parent=1 // pred_fallthru
      _
    // Predicated region
    $region26: #{tpu_custom_call.1} parent=1 // pred_check
      _
    $region27: #{tpu_custom_call.1} parent=1 // pred_check_branch
      %63 = sbr.rel (0) target = $region29
    $region28: #{tpu_custom_call.1} parent=1 // pred_region
      _
    $region29: #{tpu_custom_call.1} parent=1 // pred_fallthru
      _
    // Predicated region
    $region30: #{tpu_custom_call.1} parent=1 // pred_check
      _
    $region31: #{tpu_custom_call.1} parent=1 // pred_check_branch
      %65 = sbr.rel (0) target = $region33
    $region32: #{tpu_custom_call.1} parent=1 // pred_region
      %67 = vsyncadd [#allocation9], 0
      %s68 = sshll.u32 %s7, 4
      %s69 = int_to_ptr.hbm [resolvable:$true] %s68
      %s70 = sshll.u32 [#allocation8], 4
      %s71 = int_to_ptr.vmem [resolvable:$true] %s70
      %76 = dma.hbm_to_vmem [thread:$0]  %s69, 1024, %s71, [#allocation9], 64, 64, 4
    $region33: #{tpu_custom_call.1} parent=1 // pred_fallthru
      _
    // Predicated region
    $region34: #{tpu_custom_call.1} parent=1 // pred_check
      _
    $region35: #{tpu_custom_call.1} parent=1 // pred_check_branch
      %78 = sbr.rel (0) target = $region37
    $region36: #{tpu_custom_call.1} parent=1 // pred_region
      _
    $region37: #{tpu_custom_call.1} parent=1 // pred_fallthru
      _
    // Predicated region
    $region38: #{tpu_custom_call.1} parent=1 // pred_check
      _
    $region39: #{tpu_custom_call.1} parent=1 // pred_check_branch
      %80 = sbr.rel (0) target = $region41
    $region40: #{tpu_custom_call.1} parent=1 // pred_region
      _
    $region41: #{tpu_custom_call.1} parent=1 // pred_fallthru
      _
    // Predicated region
    $region42: #{tpu_custom_call.1} parent=1 // pred_check
      _
    $region43: #{tpu_custom_call.1} parent=1 // pred_check_branch
      %82 = sbr.rel (0) target = $region45
    $region44: #{tpu_custom_call.1} parent=1 // pred_region
      %84 = dma.done [#allocation3], 256
    $region45: #{tpu_custom_call.1} parent=1 // pred_fallthru
      _
    // Predicated region
    $region46: #{tpu_custom_call.1} parent=1 // pred_check
      _
    $region47: #{tpu_custom_call.1} parent=1 // pred_check_branch
      %86 = sbr.rel (0) target = $region49
    $region48: #{tpu_custom_call.1} parent=1 // pred_region
      %88 = dma.done [#allocation6], 2048
    $region49: #{tpu_custom_call.1} parent=1 // pred_fallthru
      _
    // Predicated region
    $region50: #{tpu_custom_call.1} parent=1 // pred_check
      _
    $region51: #{tpu_custom_call.1} parent=1 // pred_check_branch
      %90 = sbr.rel (0) target = $region53
    $region52: #{tpu_custom_call.1} parent=1 // pred_region
      %92 = dma.done [#allocation6], 1024
    $region53: #{tpu_custom_call.1} parent=1 // pred_fallthru
      _
    // Predicated region
    $region54: #{tpu_custom_call.1} parent=1 // pred_check
      _
    $region55: #{tpu_custom_call.1} parent=1 // pred_check_branch
      %94 = sbr.rel (0) target = $region57
    $region56: #{tpu_custom_call.1} parent=1 // pred_region
      %96 = dma.done [#allocation9], 1024
    $region57: #{tpu_custom_call.1} parent=1 // pred_fallthru
      _
    %v97 = vld [vmem:[#allocation2] sm:$0xff]
    %v98 = vld [vmem:[#allocation2 + $0x8] sm:$0xff]
    %v99 = vmul.f32 %v97, 2.0
    %v100 = vmul.f32 %v98, 2.0
    %v101 = vsub.f32 %v99, 1.0
    %v102 = vsub.f32 %v100, 1.0
    %vm103 = vcmp.ge.f32.partialorder %v101, 0.0
    %vm104 = vcmp.ge.f32.partialorder %v102, 0.0
    %v105 = vsel %vm103, 1.0, -1.0
    %v106 = vsel %vm104, 1.0, -1.0
    %v107 = vpack.c.bf16 %v105, %v105
    %v108 = vpack.c.bf16 %v106, %v106
    %v109 = vld [vmem:[#allocation5] sm:$0xf]
    %v110 = vld [vmem:[#allocation5 + $0x4] sm:$0xf]
    %v111 = vld [vmem:[#allocation5 + $0x8] sm:$0xf]
    %v112 = vld [vmem:[#allocation5 + $0xc] sm:$0xf]
    %v113 = vld [vmem:[#allocation5 + $0x10] sm:$0xf]
    %v114 = vld [vmem:[#allocation5 + $0x14] sm:$0xf]
    %v115 = vld [vmem:[#allocation5 + $0x18] sm:$0xf]
    %v116 = vld [vmem:[#allocation5 + $0x1c] sm:$0xf]
    %v117 = vld [vmem:[#allocation5 + $0x20] sm:$0xf]
    %v118 = vld [vmem:[#allocation5 + $0x24] sm:$0xf]
    %v119 = vld [vmem:[#allocation5 + $0x28] sm:$0xf]
    %v120 = vld [vmem:[#allocation5 + $0x2c] sm:$0xf]
    %v121 = vld [vmem:[#allocation5 + $0x30] sm:$0xf]
    %v122 = vld [vmem:[#allocation5 + $0x34] sm:$0xf]
    %v123 = vld [vmem:[#allocation5 + $0x38] sm:$0xf]
    %v124 = vld [vmem:[#allocation5 + $0x3c] sm:$0xf]
    %v125 = vld [vmem:[#allocation5 + $0x40] sm:$0xf]
    %v126 = vld [vmem:[#allocation5 + $0x44] sm:$0xf]
    %v127 = vld [vmem:[#allocation5 + $0x48] sm:$0xf]
    %v128 = vld [vmem:[#allocation5 + $0x4c] sm:$0xf]
    %v129 = vld [vmem:[#allocation5 + $0x50] sm:$0xf]
    %v130 = vld [vmem:[#allocation5 + $0x54] sm:$0xf]
    %v131 = vld [vmem:[#allocation5 + $0x58] sm:$0xf]
    %v132 = vld [vmem:[#allocation5 + $0x5c] sm:$0xf]
    %v133 = vld [vmem:[#allocation5 + $0x60] sm:$0xf]
    %v134 = vld [vmem:[#allocation5 + $0x64] sm:$0xf]
    %v135 = vld [vmem:[#allocation5 + $0x68] sm:$0xf]
    %v136 = vld [vmem:[#allocation5 + $0x6c] sm:$0xf]
    %v137 = vld [vmem:[#allocation5 + $0x70] sm:$0xf]
    %v138 = vld [vmem:[#allocation5 + $0x74] sm:$0xf]
    %v139 = vld [vmem:[#allocation5 + $0x78] sm:$0xf]
    %v140 = vld [vmem:[#allocation5 + $0x7c] sm:$0xf]
    %v173 = vunpack.c.l.b16 %v109
    %v174 = vunpack.c.l.b16 %v110
    %v175 = vunpack.c.l.b16 %v111
    %v176 = vunpack.c.l.b16 %v112
    %v177 = vunpack.c.l.b16 %v113
    %v178 = vunpack.c.l.b16 %v114
    %v179 = vunpack.c.l.b16 %v115
    %v180 = vunpack.c.l.b16 %v116
    %v181 = vunpack.c.l.b16 %v117
    %v182 = vunpack.c.l.b16 %v118
    %v183 = vunpack.c.l.b16 %v119
    %v184 = vunpack.c.l.b16 %v120
    %v185 = vunpack.c.l.b16 %v121
    %v186 = vunpack.c.l.b16 %v122
    %v187 = vunpack.c.l.b16 %v123
    %v188 = vunpack.c.l.b16 %v124
    %v189 = vunpack.c.l.b16 %v125
    %v190 = vunpack.c.l.b16 %v126
    %v191 = vunpack.c.l.b16 %v127
    %v192 = vunpack.c.l.b16 %v128
    %v193 = vunpack.c.l.b16 %v129
    %v194 = vunpack.c.l.b16 %v130
    %v195 = vunpack.c.l.b16 %v131
    %v196 = vunpack.c.l.b16 %v132
    %v197 = vunpack.c.l.b16 %v133
    %v198 = vunpack.c.l.b16 %v134
    %v199 = vunpack.c.l.b16 %v135
    %v200 = vunpack.c.l.b16 %v136
    %v201 = vunpack.c.l.b16 %v137
    %v202 = vunpack.c.l.b16 %v138
    %v203 = vunpack.c.l.b16 %v139
    %v204 = vunpack.c.l.b16 %v140
    %v205 = vpack.c.b16 %v174, %v173
    %v206 = vpack.c.b16 %v176, %v175
    %v207 = vpack.c.b16 %v178, %v177
    %v208 = vpack.c.b16 %v180, %v179
    %v209 = vpack.c.b16 %v182, %v181
    %v210 = vpack.c.b16 %v184, %v183
    %v211 = vpack.c.b16 %v186, %v185
    %v212 = vpack.c.b16 %v188, %v187
    %v213 = vpack.c.b16 %v190, %v189
    %v214 = vpack.c.b16 %v192, %v191
    %v215 = vpack.c.b16 %v194, %v193
    %v216 = vpack.c.b16 %v196, %v195
    %v217 = vpack.c.b16 %v198, %v197
    %v218 = vpack.c.b16 %v200, %v199
    %v219 = vpack.c.b16 %v202, %v201
    %v220 = vpack.c.b16 %v204, %v203
    %237 = vmatpush.bf16.msra.mxu0 %v212
    %238 = vmatpush.bf16.msra.mxu0 %v211
    %239 = vmatpush.bf16.msra.mxu0 %v210
    %240 = vmatpush.bf16.msra.mxu0 %v209
    %241 = vmatpush.bf16.msra.mxu0 %v208
    %242 = vmatpush.bf16.msra.mxu0 %v207
    %243 = vmatpush.bf16.msra.mxu0 %v206
    %244 = vmatpush.bf16.msra.mxu0 %v205
    %245 = vmatmul.bf16.gmra.mxu0 %v107
    %v246 = vpop.f32.mrf.mxu0
    %v247 = vadd.f32 0.0, %v246
    %v248 = vpop.f32.mrf.mxu0
    %249 = vdwg.mxu0
    %250 = vmatpush.bf16.msra.mxu0 %v220
    %251 = vmatpush.bf16.msra.mxu0 %v219
    %252 = vmatpush.bf16.msra.mxu0 %v218
    %253 = vmatpush.bf16.msra.mxu0 %v217
    %254 = vmatpush.bf16.msra.mxu0 %v216
    %255 = vmatpush.bf16.msra.mxu0 %v215
    %256 = vmatpush.bf16.msra.mxu0 %v214
    %257 = vmatpush.bf16.msra.mxu0 %v213
    %258 = vmatmul.bf16.gmra.mxu0 %v108
    %v259 = vpop.f32.mrf.mxu0
    %v260 = vadd.f32 %v247, %v259
    %v261 = vpop.f32.mrf.mxu0
    %262 = vdwg.mxu0
    %v263 = vld [vmem:[%s2] sm:$0x1]
    %v265 = vperm.slane %v263, 0
    %v267 = vmul.f32 %v260, %v265
    %v268 = vld [vmem:[%s3] sm:$0x1]
    %v270 = vperm.slane %v268, 0
    %v272 = vadd.f32 %v267, %v270
    %vm273 = vcmp.ge.f32.partialorder %v272, 0.0
    %v274 = vsel %vm273, 1.0, -1.0
    %v275 = vpack.c.bf16 %v274, %v274
    %v276 = vld [vmem:[#allocation7] sm:$0xf]
    %v277 = vld [vmem:[#allocation7 + $0x4] sm:$0xf]
    %v278 = vld [vmem:[#allocation7 + $0x8] sm:$0xf]
    %v279 = vld [vmem:[#allocation7 + $0xc] sm:$0xf]
    %v280 = vld [vmem:[#allocation7 + $0x10] sm:$0xf]
    %v281 = vld [vmem:[#allocation7 + $0x14] sm:$0xf]
    %v282 = vld [vmem:[#allocation7 + $0x18] sm:$0xf]
    %v283 = vld [vmem:[#allocation7 + $0x1c] sm:$0xf]
    %v284 = vld [vmem:[#allocation7 + $0x20] sm:$0xf]
    %v285 = vld [vmem:[#allocation7 + $0x24] sm:$0xf]
    %v286 = vld [vmem:[#allocation7 + $0x28] sm:$0xf]
    %v287 = vld [vmem:[#allocation7 + $0x2c] sm:$0xf]
    %v288 = vld [vmem:[#allocation7 + $0x30] sm:$0xf]
    %v289 = vld [vmem:[#allocation7 + $0x34] sm:$0xf]
    %v290 = vld [vmem:[#allocation7 + $0x38] sm:$0xf]
    %v291 = vld [vmem:[#allocation7 + $0x3c] sm:$0xf]
    %v308 = vunpack.c.l.b16 %v276
    %v309 = vunpack.c.l.b16 %v277
    %v310 = vunpack.c.l.b16 %v278
    %v311 = vunpack.c.l.b16 %v279
    %v312 = vunpack.c.l.b16 %v280
    %v313 = vunpack.c.l.b16 %v281
    %v314 = vunpack.c.l.b16 %v282
    %v315 = vunpack.c.l.b16 %v283
    %v316 = vunpack.c.l.b16 %v284
    %v317 = vunpack.c.l.b16 %v285
    %v318 = vunpack.c.l.b16 %v286
    %v319 = vunpack.c.l.b16 %v287
    %v320 = vunpack.c.l.b16 %v288
    %v321 = vunpack.c.l.b16 %v289
    %v322 = vunpack.c.l.b16 %v290
    %v323 = vunpack.c.l.b16 %v291
    %v324 = vpack.c.b16 %v309, %v308
    %v325 = vpack.c.b16 %v311, %v310
    %v326 = vpack.c.b16 %v313, %v312
    %v327 = vpack.c.b16 %v315, %v314
    %v328 = vpack.c.b16 %v317, %v316
    %v329 = vpack.c.b16 %v319, %v318
    %v330 = vpack.c.b16 %v321, %v320
    %v331 = vpack.c.b16 %v323, %v322
    %340 = vmatpush.bf16.msra.mxu0 %v331
    %341 = vmatpush.bf16.msra.mxu0 %v330
    %342 = vmatpush.bf16.msra.mxu0 %v329
    %343 = vmatpush.bf16.msra.mxu0 %v328
    %344 = vmatpush.bf16.msra.mxu0 %v327
    %345 = vmatpush.bf16.msra.mxu0 %v326
    %346 = vmatpush.bf16.msra.mxu0 %v325
    %347 = vmatpush.bf16.msra.mxu0 %v324
    %348 = vmatmul.bf16.gmra.mxu0 %v275
    %v349 = vpop.f32.mrf.mxu0
    %v350 = vadd.f32 0.0, %v349
    %v351 = vpop.f32.mrf.mxu0
    %352 = vdwg.mxu0
    %v353 = vld [vmem:[%s5] sm:$0x1]
    %v355 = vperm.slane %v353, 0
    %v357 = vmul.f32 %v350, %v355
    %v358 = vld [vmem:[%s6] sm:$0x1]
    %v360 = vperm.slane %v358, 0
    %v362 = vadd.f32 %v357, %v360
    %vm363 = vcmp.ge.f32.partialorder %v362, 0.0
    %v364 = vsel %vm363, 1.0, -1.0
    %v365 = vpack.c.bf16 %v364, %v364
    %v366 = vld [vmem:[#allocation8] sm:$0xf]
    %v367 = vld [vmem:[#allocation8 + $0x4] sm:$0xf]
    %v368 = vld [vmem:[#allocation8 + $0x8] sm:$0xf]
    %v369 = vld [vmem:[#allocation8 + $0xc] sm:$0xf]
    %v370 = vld [vmem:[#allocation8 + $0x10] sm:$0xf]
    %v371 = vld [vmem:[#allocation8 + $0x14] sm:$0xf]
    %v372 = vld [vmem:[#allocation8 + $0x18] sm:$0xf]
    %v373 = vld [vmem:[#allocation8 + $0x1c] sm:$0xf]
    %v374 = vld [vmem:[#allocation8 + $0x20] sm:$0xf]
    %v375 = vld [vmem:[#allocation8 + $0x24] sm:$0xf]
    %v376 = vld [vmem:[#allocation8 + $0x28] sm:$0xf]
    %v377 = vld [vmem:[#allocation8 + $0x2c] sm:$0xf]
    %v378 = vld [vmem:[#allocation8 + $0x30] sm:$0xf]
    %v379 = vld [vmem:[#allocation8 + $0x34] sm:$0xf]
    %v380 = vld [vmem:[#allocation8 + $0x38] sm:$0xf]
    %v381 = vld [vmem:[#allocation8 + $0x3c] sm:$0xf]
    %v398 = vunpack.c.l.b16 %v366
    %v399 = vunpack.c.l.b16 %v367
    %v400 = vunpack.c.l.b16 %v368
    %v401 = vunpack.c.l.b16 %v369
    %v402 = vunpack.c.l.b16 %v370
    %v403 = vunpack.c.l.b16 %v371
    %v404 = vunpack.c.l.b16 %v372
    %v405 = vunpack.c.l.b16 %v373
    %v406 = vunpack.c.l.b16 %v374
    %v407 = vunpack.c.l.b16 %v375
    %v408 = vunpack.c.l.b16 %v376
    %v409 = vunpack.c.l.b16 %v377
    %v410 = vunpack.c.l.b16 %v378
    %v411 = vunpack.c.l.b16 %v379
    %v412 = vunpack.c.l.b16 %v380
    %v413 = vunpack.c.l.b16 %v381
    %v414 = vpack.c.b16 %v399, %v398
    %v415 = vpack.c.b16 %v401, %v400
    %v416 = vpack.c.b16 %v403, %v402
    %v417 = vpack.c.b16 %v405, %v404
    %v418 = vpack.c.b16 %v407, %v406
    %v419 = vpack.c.b16 %v409, %v408
    %v420 = vpack.c.b16 %v411, %v410
    %v421 = vpack.c.b16 %v413, %v412
    %430 = vmatpush.bf16.msra.mxu0 %v421
    %431 = vmatpush.bf16.msra.mxu0 %v420
    %432 = vmatpush.bf16.msra.mxu0 %v419
    %433 = vmatpush.bf16.msra.mxu0 %v418
    %434 = vmatpush.bf16.msra.mxu0 %v417
    %435 = vmatpush.bf16.msra.mxu0 %v416
    %436 = vmatpush.bf16.msra.mxu0 %v415
    %437 = vmatpush.bf16.msra.mxu0 %v414
    %438 = vmatmul.bf16.gmra.mxu0 %v365
    %v439 = vpop.f32.mrf.mxu0
    %v440 = vadd.f32 0.0, %v439
    %v441 = vpop.f32.mrf.mxu0
    %442 = vdwg.mxu0
    %v443 = vld [vmem:[%s8] sm:$0x1]
    %v445 = vperm.slane %v443, 0
    %v447 = vmul.f32 %v440, %v445
    %v448 = vld [vmem:[%s9] sm:$0x1]
    %v450 = vperm.slane %v448, 0
    %v452 = vadd.f32 %v447, %v450
    %453 = vst [vmem:[#allocation10] sm:$0xff] %v452
    // Predicated region
    $region58: #{tpu_custom_call.1} parent=1 // pred_check
      _
    $region59: #{tpu_custom_call.1} parent=1 // pred_check_branch
      %455 = sbr.rel (0) target = $region61
    $region60: #{tpu_custom_call.1} parent=1 // pred_region
      %457 = vsyncadd [#allocation4], 0
      %s459 = sshll.u32 [#allocation10], 4
      %s460 = int_to_ptr.vmem [resolvable:$true] %s459
      %s461 = sshll.u32 %s10, 4
      %s462 = int_to_ptr.hbm [resolvable:$true] %s461
      %464 = dma.vmem_to_hbm [thread:$0]  %s460, 128, %s462, [#allocation4]
    $region61: #{tpu_custom_call.1} parent=1 // pred_fallthru
      _
    // Predicated region
    $region62: #{tpu_custom_call.1} parent=1 // pred_check
      _
    $region63: #{tpu_custom_call.1} parent=1 // pred_check_branch
      %466 = sbr.rel (0) target = $region65
    $region64: #{tpu_custom_call.1} parent=1 // pred_region
      %468 = dma.done [#allocation4], 128
    $region65: #{tpu_custom_call.1} parent=1 // pred_fallthru
      _
    %469 = vsyncpa [#allocation3], 1
    %470 = vsyncpa [#allocation6], 1
    %471 = vsyncpa [#allocation9], 1
    %472 = vsyncpa [#allocation4], 1

</llo_original>
